<compile_context>
chip_gen: v5e
topology: v5e:2x2
jax: 0.10.0
libtpu: 0.0.40
codegen_flags: <defaults>
</compile_context>

<pallas_src>
import functools

import jax
import jax.numpy as jnp
from jax.experimental import pallas as pl
from jax.experimental.pallas import tpu as pltpu


def _round_up(v, m):
    return (v + m - 1) // m * m


def _simam_kernel(x_ref, o_ref, *, inv_hw, inv_n, eps):
    # x_ref: (tile_rows, hw). Each row is one (b, c) spatial plane, so the
    # per-(b, c) reductions are last-axis (lane) reductions on the XLU.

    # Pass 1: per-row mean.
    mu = jnp.sum(x_ref[...].astype(jnp.float32), axis=-1, keepdims=True) * inv_hw

    # Pass 2 (data already resident in VMEM): exact two-pass variance, matching
    # the reference (x - mean)^2 formulation — no one-pass cancellation risk.
    d = x_ref[...].astype(jnp.float32) - mu
    d2 = d * d
    s = jnp.sum(d2, axis=-1, keepdims=True)

    # y = d2 / (4*(s/n + eps)) + 0.5 ; out = x * sigmoid(y) = x * (0.5*tanh(y/2) + 0.5).
    # Fold the /2 of tanh's argument into the per-row scale:
    #   y/2 = d2 / (8*(s/n + eps)) + 0.25
    # The scale is (tile_rows, 1): an exact reciprocal costs nothing per element.
    half_scale = pl.reciprocal(8.0 * (s * inv_n + eps), approx=False)
    sig = 0.5 * jnp.tanh(d2 * half_scale + 0.25) + 0.5
    o_ref[...] = (x_ref[...].astype(jnp.float32) * sig).astype(o_ref.dtype)


def _pick_tile_rows(rows, hw, itemsize, row_mult, target_block_bytes=2 << 20):
    if rows <= row_mult:
        # Single full-extent block (allowed even when rows is not a sublane multiple).
        return rows
    bytes_per_row = max(hw * itemsize, 1)
    # ~2 MiB I/O blocks: with input + output double-buffered plus f32 temporaries
    # this stays comfortably inside the 32 MiB scoped limit on every generation
    # (including v7x's 64 MiB physical VMEM).
    budget_rows = max(row_mult, (target_block_bytes // bytes_per_row) // row_mult * row_mult)
    # Aim for >= 8 grid steps (an even multiple of v7x's 2 TensorCores) so the
    # megacore split is balanced and the DMA pipeline has depth to hide latency.
    steps_target = 8
    rows_per_step = -(-rows // steps_target)
    t_for_steps = _round_up(rows_per_step, row_mult)
    return max(row_mult, min(budget_rows, t_for_steps))


def simam_embedding(x, epsilon=1e-4, tile_rows=None, vmem_limit_bytes=32 << 20):
    """x: (B, C, H, W). Returns x * sigmoid(y) with SimAM y, same shape/dtype."""
    B, C, H, W = x.shape
    hw = H * W
    rows = B * C
    # TODO(synk): H = W = 1 gives n = 0 in the PyTorch module (division by zero); clamp to 1 here.
    n = float(max(hw - 1, 1))
    itemsize = jnp.dtype(x.dtype).itemsize
    row_mult = max(8, 32 // itemsize)  # 8 for f32, 16 for bf16, 32 for int8

    if tile_rows is None:
        tile_rows = _pick_tile_rows(rows, hw, itemsize, row_mult)
    grid = (pl.cdiv(rows, tile_rows),)

    # TODO(synk): for very large spatial planes (row_mult * H*W blocks beyond a few MiB)
    # add a second "arbitrary" grid axis over H*W with scratch accumulators to keep
    # blocks inside v7x's 64 MiB VMEM; not needed for typical SimAM feature maps.
    x2d = x.reshape(rows, hw)  # contiguous-merge reshape: no HBM copy

    kernel = functools.partial(
        _simam_kernel, inv_hw=1.0 / float(hw), inv_n=1.0 / n, eps=float(epsilon)
    )
    out2d = pl.pallas_call(
        kernel,
        out_shape=jax.ShapeDtypeStruct((rows, hw), x.dtype),
        grid_spec=pltpu.PrefetchScalarGridSpec(
            num_scalar_prefetch=0,
            grid=grid,
            in_specs=[pl.BlockSpec((tile_rows, hw), lambda i: (i, 0))],
            out_specs=pl.BlockSpec((tile_rows, hw), lambda i: (i, 0)),
        ),
        compiler_params=pltpu.CompilerParams(
            dimension_semantics=("parallel",),
            vmem_limit_bytes=vmem_limit_bytes,
        ),
    )(x2d)

    return out2d.reshape(B, C, H, W)


def _reference(x, epsilon=1e-4):
    B, C, H, W = x.shape
    n = max(H * W - 1, 1)
    xf = x.astype(jnp.float32)
    mu = jnp.mean(xf, axis=(2, 3), keepdims=True)
    d2 = (xf - mu) ** 2
    y = d2 / (4.0 * (jnp.sum(d2, axis=(2, 3), keepdims=True) / n + epsilon)) + 0.5
    return (xf * jax.nn.sigmoid(y)).astype(x.dtype)


if __name__ == "__main__":
    key = jax.random.PRNGKey(0)

    # Primary case (module-consistent small shape).
    B, C, H, W = 2, 4, 16, 16
    x = jax.random.normal(key, (B, C, H, W), dtype=jnp.float32)
    out = jax.block_until_ready(simam_embedding(x, epsilon=1e-4))
    ref = _reference(x, epsilon=1e-4)
    assert out.shape == ref.shape and out.dtype == ref.dtype
    assert jnp.max(jnp.abs(out.astype(jnp.float32) - ref.astype(jnp.float32))) < 1e-4

    # Non-aligned case: H*W not a multiple of 128 and rows not a multiple of the
    # row tile (exercises the no-pad full-extent lane block + partial row block).
    x2 = jax.random.normal(jax.random.PRNGKey(0), (3, 5, 12, 12), dtype=jnp.float32)
    out2 = jax.block_until_ready(simam_embedding(x2, epsilon=1e-4))
    ref2 = _reference(x2, epsilon=1e-4)
    assert out2.shape == ref2.shape and out2.dtype == ref2.dtype
    assert jnp.max(jnp.abs(out2.astype(jnp.float32) - ref2.astype(jnp.float32))) < 1e-4

    print("KERNEL_OK")
</pallas_src>

<mosaic_0001>
module attributes {stable_mosaic.version = 11 : i64} {
  func.func @_simam_kernel(%arg0: i32, %arg1: memref<8x256xf32, #tpu.memory_space<vmem>>, %arg2: memref<8x256xf32, #tpu.memory_space<vmem>>) attributes {dimension_semantics = [#tpu.dimension_semantics<parallel>], iteration_bounds = array<i64: 1>, scalar_prefetch = 0 : i64, scratch_operands = 0 : i64, tpu.core_type = #tpu.core_type<tc>, window_params = [{transform_indices = @transform_0, window_bounds = array<i64: 8, 256>}, {transform_indices = @transform_1, window_bounds = array<i64: 8, 256>}]} {
    %c0 = arith.constant 0 : index
    %c0_0 = arith.constant 0 : index
    %0 = vector.load %arg1[%c0, %c0_0] : memref<8x256xf32, #tpu.memory_space<vmem>>, vector<8x256xf32>
    %cst = arith.constant dense<0.000000e+00> : vector<8xf32>
    %1 = vector.multi_reduction <add>, %0, %cst [1] : vector<8x256xf32> to vector<8xf32>
    %2 = vector.shape_cast %1 : vector<8xf32> to vector<8x1xf32>
    %cst_1 = arith.constant 3.906250e-03 : f32
    %3 = vector.broadcast %cst_1 : f32 to vector<8x1xf32>
    %4 = arith.mulf %2, %3 : vector<8x1xf32>
    %c0_2 = arith.constant 0 : index
    %c0_3 = arith.constant 0 : index
    %5 = vector.load %arg1[%c0_2, %c0_3] : memref<8x256xf32, #tpu.memory_space<vmem>>, vector<8x256xf32>
    %6 = vector.broadcast %4 : vector<8x1xf32> to vector<8x256xf32>
    %7 = arith.subf %5, %6 : vector<8x256xf32>
    %8 = arith.mulf %7, %7 : vector<8x256xf32>
    %cst_4 = arith.constant dense<0.000000e+00> : vector<8xf32>
    %9 = vector.multi_reduction <add>, %8, %cst_4 [1] : vector<8x256xf32> to vector<8xf32>
    %10 = vector.shape_cast %9 : vector<8xf32> to vector<8x1xf32>
    %cst_5 = arith.constant 0.00392156886 : f32
    %11 = vector.broadcast %cst_5 : f32 to vector<8x1xf32>
    %12 = arith.mulf %10, %11 : vector<8x1xf32>
    %cst_6 = arith.constant 9.99999974E-5 : f32
    %13 = vector.broadcast %cst_6 : f32 to vector<8x1xf32>
    %14 = arith.addf %12, %13 : vector<8x1xf32>
    %cst_7 = arith.constant 8.000000e+00 : f32
    %15 = vector.broadcast %cst_7 : f32 to vector<8x1xf32>
    %16 = arith.mulf %15, %14 : vector<8x1xf32>
    %17 = tpu.reciprocal %16 : vector<8x1xf32> -> vector<8x1xf32>
    %18 = vector.broadcast %17 : vector<8x1xf32> to vector<8x256xf32>
    %19 = arith.mulf %8, %18 : vector<8x256xf32>
    %cst_8 = arith.constant 2.500000e-01 : f32
    %20 = vector.broadcast %cst_8 : f32 to vector<8x256xf32>
    %21 = arith.addf %19, %20 : vector<8x256xf32>
    %22 = math.tanh %21 : vector<8x256xf32>
    %cst_9 = arith.constant 5.000000e-01 : f32
    %23 = vector.broadcast %cst_9 : f32 to vector<8x256xf32>
    %24 = arith.mulf %23, %22 : vector<8x256xf32>
    %cst_10 = arith.constant 5.000000e-01 : f32
    %25 = vector.broadcast %cst_10 : f32 to vector<8x256xf32>
    %26 = arith.addf %24, %25 : vector<8x256xf32>
    %c0_11 = arith.constant 0 : index
    %c0_12 = arith.constant 0 : index
    %27 = vector.load %arg1[%c0_11, %c0_12] : memref<8x256xf32, #tpu.memory_space<vmem>>, vector<8x256xf32>
    %28 = arith.mulf %27, %26 : vector<8x256xf32>
    %c0_13 = arith.constant 0 : index
    %c0_14 = arith.constant 0 : index
    %29 = vector.load %arg2[%c0_13, %c0_14] : memref<8x256xf32, #tpu.memory_space<vmem>>, vector<8x256xf32>
    tpu.vector_store %arg2[%c0_13, %c0_14], %28 {strides = array<i32>} : memref<8x256xf32, #tpu.memory_space<vmem>>, vector<8x256xf32>,
    return
  }
  func.func @transform_0(%arg0: i32) -> (i32, i32) {
    %c0_i32 = arith.constant 0 : i32
    %c0_i32_0 = arith.constant 0 : i32
    return %arg0, %c0_i32 : i32, i32
  }
  func.func @transform_1(%arg0: i32) -> (i32, i32) {
    %c0_i32 = arith.constant 0 : i32
    %c0_i32_0 = arith.constant 0 : i32
    return %arg0, %c0_i32 : i32, i32
  }
}

</mosaic_0001>

<llo_original>
// kernel: tpu_custom_call.1
$region0: #{tpu_custom_call.1}
  #allocation0 [shape = 'u32[]', space=smem, size = 0x4, offset = 0x4, fixed_abs, tag = 'smem constant byte address 0x4 - core index']
  #allocation1 [shape = 'u32[72,128]{1,0:T(1,128)}', space=vmem, size = 0x9000, scoped, tag = 'internal scratch']
  %s0 = inlined_call_operand.hbm [shape: f32[8,256], index: 0, kind: input, shape index: {}]
  %s1 = inlined_call_operand.hbm [shape: f32[8,256], index: 1, kind: output, shape index: {}]
  %s2 = sld [smem:[#allocation0]]
  $region18: #{tpu_custom_call.1} parent=0
    _
  %s4 = ssub.s32 1, %s2
  %s5 = scalar_select 0, %s4, %s2
  $region1: #{tpu_custom_call.1} parent=0
    #allocation2 [shape = 'u8[8192]{0}', space=vmem, size = 0x2000, scoped, tag = 'input window, operand 0, single buffered']
    #allocation3 [shape = 's32[1]{0}', space=sflag, size = 0x4, scoped, tag = 'scoped memory for tpu_custom_call.1']
    #allocation4 [shape = 's32[1]{0}', space=sflag, size = 0x4, scoped, tag = 'scoped memory for tpu_custom_call.1']
    #allocation5 [shape = 'u8[8192]{0}', space=vmem, size = 0x2000, scoped, tag = 'output window, operand 0, single buffered']
    %6 = vsyncpa [#allocation3], 0
    %7 = vsyncpa [#allocation4], 0
    // Predicated region
    $region2: #{tpu_custom_call.1} parent=1 // pred_check
      _
    $region3: #{tpu_custom_call.1} parent=1 // pred_check_branch
      %9 = sbr.rel (0) target = $region5
    $region4: #{tpu_custom_call.1} parent=1 // pred_region
      %11 = vsyncadd [#allocation3], 0
      %s13 = sshll.u32 %s0, 4
      %s14 = int_to_ptr.hbm [resolvable:$true] %s13
      %s15 = sshll.u32 [#allocation2], 4
      %s16 = int_to_ptr.vmem [resolvable:$true] %s15
      %18 = dma.hbm_to_vmem [thread:$0]  %s14, 256, %s16, [#allocation3]
    $region5: #{tpu_custom_call.1} parent=1 // pred_fallthru
      _
    // Predicated region
    $region6: #{tpu_custom_call.1} parent=1 // pred_check
      _
    $region7: #{tpu_custom_call.1} parent=1 // pred_check_branch
      %20 = sbr.rel (0) target = $region9
    $region8: #{tpu_custom_call.1} parent=1 // pred_region
      %22 = dma.done [#allocation3], 256
    $region9: #{tpu_custom_call.1} parent=1 // pred_fallthru
      _
    %v23 = vld [vmem:[#allocation2] sm:$0xff]
    %v24 = vld [vmem:[#allocation2 + $0x8] sm:$0xff]
    %v25 = vadd.f32 %v23, %v24
    %26 = vadd.xlane.f32.xlu0 %v25
    %v27 = vpop.xlane.xlu0 %26
    %v28 = vmul.f32 %v27, 0.00390625
    %v29 = vsub.f32 %v23, %v28
    %v30 = vsub.f32 %v24, %v28
    %v31 = vmul.f32 %v29, %v29
    %v32 = vmul.f32 %v30, %v30
    %v33 = vadd.f32 %v31, %v32
    %34 = vadd.xlane.f32.xlu0 %v33
    %v35 = vpop.xlane.xlu0 %34
    %v36 = vmul.f32 %v35, 0.003921569
    %v37 = vadd.f32 %v36, 0.0001
    %v38 = vmul.f32 %v37, 8.0
    %v39 = vrcp.pop %v38
    %v40 = vmul.f32 %v38, %v39
    %v41 = vsub.f32 1.0, %v40
    %v42 = vmul.f32 %v39, %v41
    %v43 = vadd.f32 %v39, %v42
    %vm44 = vweird.f32 %v38
    %vm45 = vweird.f32 %v39
    %vm46 = vmor %vm44, %vm45
    %v47 = vsel %vm46, %v39, %v43
    %v48 = vand.u32 2147483647, %v38
    %vm49 = vcmp.eq.f32.partialorder %v48, 8.507059e+37
    %v50 = vand.u32 %v38, 2147483648
    %v51 = vor.u32 1.1754944e-38, %v50
    %v52 = vsel %vm49, %v51, %v47
    %v53 = vmul.f32 %v31, %v52
    %v54 = vmul.f32 %v32, %v52
    %v55 = vadd.f32 %v53, 0.25
    %v56 = vadd.f32 %v54, 0.25
    %v57 = vtanh.pop %v55
    %v58 = vtanh.pop %v56
    %v59 = vmul.f32 %v57, 0.5
    %v60 = vmul.f32 %v58, 0.5
    %v61 = vadd.f32 %v59, 0.5
    %v62 = vadd.f32 %v60, 0.5
    %v63 = vmul.f32 %v23, %v61
    %v64 = vmul.f32 %v24, %v62
    %65 = vst [vmem:[#allocation5] sm:$0xff] %v63
    %66 = vst [vmem:[#allocation5 + $0x8] sm:$0xff] %v64
    // Predicated region
    $region10: #{tpu_custom_call.1} parent=1 // pred_check
      _
    $region11: #{tpu_custom_call.1} parent=1 // pred_check_branch
      %68 = sbr.rel (0) target = $region13
    $region12: #{tpu_custom_call.1} parent=1 // pred_region
      %70 = vsyncadd [#allocation4], 0
      %s72 = sshll.u32 [#allocation5], 4
      %s73 = int_to_ptr.vmem [resolvable:$true] %s72
      %s74 = sshll.u32 %s1, 4
      %s75 = int_to_ptr.hbm [resolvable:$true] %s74
      %77 = dma.vmem_to_hbm [thread:$0]  %s73, 256, %s75, [#allocation4]
    $region13: #{tpu_custom_call.1} parent=1 // pred_fallthru
      _
    // Predicated region
    $region14: #{tpu_custom_call.1} parent=1 // pred_check
      _
    $region15: #{tpu_custom_call.1} parent=1 // pred_check_branch
      %79 = sbr.rel (0) target = $region17
    $region16: #{tpu_custom_call.1} parent=1 // pred_region
      %81 = dma.done [#allocation4], 256
    $region17: #{tpu_custom_call.1} parent=1 // pred_fallthru
      _
    %82 = vsyncpa [#allocation3], 1
    %83 = vsyncpa [#allocation4], 1

</llo_original>
